<compile_context>
chip_gen: v5e
topology: v5e:2x2
jax: 0.10.0
libtpu: 0.0.40
codegen_flags: <defaults>
</compile_context>

<pallas_src>
import functools
import math

import jax
import jax.numpy as jnp
from jax import lax
from jax.experimental import pallas as pl
from jax.experimental.pallas import tpu as pltpu

_LANE = 128
_SUBLANE = 8


def _round_up(n, m):
    return ((n + m - 1) // m) * m


def _cdiv(a, b):
    return (a + b - 1) // b


def _pad2d(a, rows, cols):
    r, c = a.shape
    if r == rows and c == cols:
        return a
    return jnp.pad(a, ((0, rows - r), (0, cols - c)))


def _vmem_cap_bytes():
    """Physical VMEM per core (generation-aware), with a safe fallback."""
    try:
        cap = int(pltpu.get_tpu_info().vmem_capacity_bytes)
        if cap > 0:
            return cap
    except Exception:
        pass
    return 64 * 1024 * 1024  # v7x-sized conservative fallback


def _vmem_budget(nbytes, cap):
    hi = (cap * 3) // 4              # leave headroom for compiler scratch
    lo = min(16 * 1024 * 1024, hi)
    return int(min(max(int(nbytes), lo), hi))


# ----------------------------------------------------------------------------
# Stage 1: attrs -> unit-normalized prototypes, emitted transposed [P_p, C_p]
# ----------------------------------------------------------------------------
def _protos_kernel(attrs_ref, w1_ref, b1_ref, w2_ref, b2_ref, w3_ref, b3_ref,
                   pt_ref, *, n_cls, transpose_out):
    # Stage 1 is tiny; keep full f32 precision so the class-standardization
    # statistics match the reference closely.

    # Linear(attr_dim, hid) + ReLU
    h = jnp.dot(attrs_ref[...], w1_ref[...],
                preferred_element_type=jnp.float32) + b1_ref[...]
    h = jnp.maximum(h, 0.0)

    # Linear(hid, hid)
    h = jnp.dot(h, w2_ref[...], preferred_element_type=jnp.float32) + b2_ref[...]

    # ClassStandardization #1 (training-mode batch stats over classes,
    # unbiased variance, divide by var + 1e-5 exactly as the PyTorch code).
    # NOTE: n_cls == 1 divides by zero, same as the original module.
    inv_nm1 = 1.0 / (n_cls - 1)
    m = jnp.mean(h, axis=0, keepdims=True)
    hc = h - m
    v = jnp.sum(hc * hc, axis=0, keepdims=True) * inv_nm1
    h = hc * pl.reciprocal(v + 1e-5, approx=False)

    h = jnp.maximum(h, 0.0)

    # ClassStandardization #2
    m = jnp.mean(h, axis=0, keepdims=True)
    hc = h - m
    v = jnp.sum(hc * hc, axis=0, keepdims=True) * inv_nm1
    h = hc * pl.reciprocal(v + 1e-5, approx=False)

    # Linear(hid, proto_dim) + ReLU  -> prototypes [C, P_p]
    protos = jnp.dot(h, w3_ref[...],
                     preferred_element_type=jnp.float32) + b3_ref[...]
    protos = jnp.maximum(protos, 0.0)

    # Row-normalize; guard rsqrt(0) for an all-zero (ReLU-killed) row.
    # The 5*5 = 25 logits scale is folded into stage 2's x normalization.
    ssq = jnp.sum(protos * protos, axis=1, keepdims=True)
    protos_n = protos * lax.rsqrt(jnp.maximum(ssq, 1e-30))

    if transpose_out:
        # Emit transposed + zero-padded over classes so stage 2 sees a
        # canonical, lane-dense [K, N] RHS with no wrapper-side round trip.
        pt = protos_n.T.astype(pt_ref.dtype)            # [P_p, C]
        if n_cls == pt_ref.shape[1]:
            pt_ref[...] = pt
        else:
            pt_ref[...] = jnp.zeros_like(pt_ref)
            pt_ref[:, :n_cls] = pt
    else:
        pt_ref[...] = protos_n.astype(pt_ref.dtype)     # [C, P_p] (fallback)


# ----------------------------------------------------------------------------
# Stage 2: logits = (25 * x / ||x||) @ protos_T      protos_T: [P_p, tc]
# ----------------------------------------------------------------------------
def _logits_kernel(x_ref, pt_ref, logits_ref, *, compute_dtype):
    x = x_ref[...].astype(jnp.float32)                       # [tb, P_p]
    ssq = jnp.sum(x * x, axis=1, keepdims=True)
    scale = 25.0 * lax.rsqrt(jnp.maximum(ssq, 1e-30))        # fold 5*5 here
    x_n = (x * scale).astype(compute_dtype)
    logits_ref[...] = jnp.dot(
        x_n, pt_ref[...], preferred_element_type=jnp.float32
    ).astype(logits_ref.dtype)


# ----------------------------------------------------------------------------
# Wrapper
# ----------------------------------------------------------------------------
def cnzsl_forward(x, attrs, params, *, compute_dtype=jnp.bfloat16,
                  tile_b=512, max_tile_c=2048):
    x = jnp.asarray(x, jnp.float32)
    attrs = jnp.asarray(attrs, jnp.float32)
    B, P = x.shape
    C, A = attrs.shape

    A_p = _round_up(A, _LANE)
    H_p = _round_up(params["w1"].shape[1], _LANE)
    P_p = _round_up(P, _LANE)

    cdt = jnp.dtype(compute_dtype)
    cdt_size = cdt.itemsize
    vmem_cap = _vmem_cap_bytes()
    vmem_hi = (vmem_cap * 3) // 4

    # Class tiling: keep the whole transposed prototype matrix resident when
    # it fits; tile classes (lane-dense multiples of 128) for large C.
    tc = min(_round_up(C, _LANE), _round_up(max_tile_c, _LANE))
    C_p = _round_up(C, tc)
    n_ct = C_p // tc

    # ---- stage 1: prototypes^T (ungridded, everything VMEM resident) -------
    # Zero-padded feature dims: padded weight/bias columns are zero, so padded
    # hidden/proto columns stay exactly zero through ReLU and the class
    # standardization and do not perturb statistics or norms.
    attrs_p = _pad2d(attrs, C, A_p)
    w1 = _pad2d(params["w1"].astype(jnp.float32), A_p, H_p)
    b1 = _pad2d(params["b1"].astype(jnp.float32), 1, H_p)
    w2 = _pad2d(params["w2"].astype(jnp.float32), H_p, H_p)
    b2 = _pad2d(params["b2"].astype(jnp.float32), 1, H_p)
    w3 = _pad2d(params["w3"].astype(jnp.float32), H_p, P_p)
    b3 = _pad2d(params["b3"].astype(jnp.float32), 1, P_p)

    vmem = pl.BlockSpec(memory_space=pltpu.MemorySpace.VMEM)
    stage1_bytes = (4 * (C * A_p + A_p * H_p + H_p * H_p + H_p * P_p + 3 * H_p
                         + 6 * C * max(H_p, P_p))
                    + P_p * C_p * cdt_size + (2 << 20))

    def _run_stage1(transposed):
        out_shape = (P_p, C_p) if transposed else (C, P_p)
        return pl.pallas_call(
            functools.partial(_protos_kernel, n_cls=C, transpose_out=transposed),
            out_shape=jax.ShapeDtypeStruct(out_shape, cdt),
            in_specs=[vmem] * 7,
            out_specs=vmem,
            compiler_params=pltpu.CompilerParams(
                vmem_limit_bytes=_vmem_budget(stage1_bytes, vmem_cap)),
        )(attrs_p, w1, b1, w2, b2, w3, b3)

    try:
        p_t = _run_stage1(True)                       # [P_p, C_p], preferred
    except Exception:
        # Fallback: row-major protos from the kernel, pad+transpose in XLA.
        p_t = jnp.transpose(_pad2d(_run_stage1(False), C_p, P_p))

    # ---- stage 2: logits, grid over (class tiles, batch tiles) -------------
    B_sub = _round_up(max(B, 1), _SUBLANE)
    tb = min(_round_up(tile_b, _SUBLANE), B_sub)
    # v7x has 2 TensorCores: make sure the "parallel" batch axis has >= 2 grid
    # steps whenever the batch allows it (harmless on single-TC v5e / v6e).
    if B_sub // tb < 2 and B_sub >= 2 * _SUBLANE:
        tb = _round_up(_cdiv(B_sub, 2), _SUBLANE)

    def _footprint(tb_, protos_bufs):
        return (protos_bufs * P_p * tc * cdt_size      # resident protos block(s)
                + 2 * tb_ * P_p * cdt_size             # double-buffered x tiles
                + 2 * tb_ * tc * 4                     # double-buffered logits tiles
                + (1 << 20))

    while _footprint(tb, 2) > vmem_hi and tb > _SUBLANE:
        tb = max(_SUBLANE, _round_up(tb // 2, _SUBLANE))

    B_p = _round_up(B, tb)
    n_bt = B_p // tb
    # Pre-cast x to the compute dtype: halves the dominant HBM read for bf16.
    x_p = _pad2d(x, B_p, P_p).astype(cdt)

    def _run_stage2(protos_buffers):
        if protos_buffers is None:
            p_spec = pl.BlockSpec((P_p, tc), lambda j, i: (0, j))
            bufs = 2
        else:
            # Constant-over-batch protos block: single-buffer halves its VMEM.
            p_spec = pl.BlockSpec((P_p, tc), lambda j, i: (0, j),
                                  pipeline_mode=pl.Buffered(protos_buffers))
            bufs = protos_buffers
        return pl.pallas_call(
            functools.partial(_logits_kernel, compute_dtype=cdt),
            out_shape=jax.ShapeDtypeStruct((B_p, C_p), jnp.float32),
            grid=(n_ct, n_bt),          # class tiles OUTER -> protos stay put
            in_specs=[pl.BlockSpec((tb, P_p), lambda j, i: (i, 0)), p_spec],
            out_specs=pl.BlockSpec((tb, tc), lambda j, i: (i, j)),
            compiler_params=pltpu.CompilerParams(
                dimension_semantics=("parallel", "parallel"),
                vmem_limit_bytes=_vmem_budget(_footprint(tb, bufs), vmem_cap)),
        )(x_p, p_t)

    try:
        logits = _run_stage2(1)
    except Exception:
        logits = _run_stage2(None)      # default double-buffering fallback

    return logits[:B, :C]


# ----------------------------------------------------------------------------
# Pure-JAX reference + init
# ----------------------------------------------------------------------------
def cnzsl_forward_ref(x, attrs, params):
    n_cls = attrs.shape[0]
    h = jnp.maximum(attrs @ params["w1"] + params["b1"], 0.0)
    h = h @ params["w2"] + params["b2"]
    m1 = h.mean(0, keepdims=True)
    v1 = ((h - m1) ** 2).sum(0, keepdims=True) / (n_cls - 1)
    h = (h - m1) / (v1 + 1e-5)
    h = jnp.maximum(h, 0.0)
    m2 = h.mean(0, keepdims=True)
    v2 = ((h - m2) ** 2).sum(0, keepdims=True) / (n_cls - 1)
    h = (h - m2) / (v2 + 1e-5)
    protos = jnp.maximum(h @ params["w3"] + params["b3"], 0.0)
    x_ns = 5.0 * x / jnp.linalg.norm(x, axis=1, keepdims=True)
    p_ns = 5.0 * protos / jnp.linalg.norm(protos, axis=1, keepdims=True)
    return x_ns @ p_ns.T


def init_params(key, attr_dim, hid_dim, proto_dim):
    k1, k2, k3, k4, k5, k6 = jax.random.split(key, 6)
    b_l1 = 1.0 / math.sqrt(attr_dim)
    b_l2 = 1.0 / math.sqrt(hid_dim)
    b_l3w = math.sqrt(3.0 / (hid_dim * proto_dim))    # USE_PROPER_INIT
    b_l3b = 1.0 / math.sqrt(hid_dim)
    return {
        "w1": jax.random.uniform(k1, (attr_dim, hid_dim), jnp.float32, -b_l1, b_l1),
        "b1": jax.random.uniform(k2, (1, hid_dim), jnp.float32, -b_l1, b_l1),
        "w2": jax.random.uniform(k3, (hid_dim, hid_dim), jnp.float32, -b_l2, b_l2),
        "b2": jax.random.uniform(k4, (1, hid_dim), jnp.float32, -b_l2, b_l2),
        "w3": jax.random.uniform(k5, (hid_dim, proto_dim), jnp.float32, -b_l3w, b_l3w),
        "b3": jax.random.uniform(k6, (1, proto_dim), jnp.float32, -b_l3b, b_l3b),
    }


if __name__ == "__main__":
    attr_dim, hid_dim, proto_dim = 32, 64, 128
    num_classes, batch = 16, 8

    key = jax.random.PRNGKey(0)
    k_attrs, k_x, k_params = jax.random.split(key, 3)

    attrs = jax.random.normal(k_attrs, (num_classes, attr_dim), jnp.float32)
    x = jax.random.normal(k_x, (batch, proto_dim), jnp.float32)
    params = init_params(k_params, attr_dim, hid_dim, proto_dim)

    ref = cnzsl_forward_ref(x, attrs, params)

    # Exactness check of the structure: f32 compute path, tight tolerance.
    logits_f32 = jax.block_until_ready(
        cnzsl_forward(x, attrs, params, compute_dtype=jnp.float32))
    assert logits_f32.shape == (batch, num_classes)
    assert jnp.allclose(logits_f32, ref, atol=2e-4, rtol=2e-4), "f32 mismatch"

    # Default performance path: bf16 MXU inputs, f32 accumulation.
    logits = jax.block_until_ready(cnzsl_forward(x, attrs, params))
    assert logits.shape == (batch, num_classes)
    assert jnp.allclose(logits, ref, atol=2.5e-1, rtol=3e-2), "bf16 mismatch"

    print("KERNEL_OK")
</pallas_src>

<mosaic_0001>
module attributes {stable_mosaic.version = 11 : i64} {
  func.func @_protos_kernel(%arg0: memref<16x128xf32, #tpu.memory_space<vmem>>, %arg1: memref<128x128xf32, #tpu.memory_space<vmem>>, %arg2: memref<1x128xf32, #tpu.memory_space<vmem>>, %arg3: memref<128x128xf32, #tpu.memory_space<vmem>>, %arg4: memref<1x128xf32, #tpu.memory_space<vmem>>, %arg5: memref<128x128xf32, #tpu.memory_space<vmem>>, %arg6: memref<1x128xf32, #tpu.memory_space<vmem>>, %arg7: memref<128x128xf32, #tpu.memory_space<vmem>>) attributes {dimension_semantics = [], scalar_prefetch = 0 : i64, scratch_operands = 0 : i64, tpu.core_type = #tpu.core_type<tc>} {
    %c0 = arith.constant 0 : index
    %c0_0 = arith.constant 0 : index
    %0 = vector.load %arg0[%c0, %c0_0] : memref<16x128xf32, #tpu.memory_space<vmem>>, vector<16x128xf32>
    %c0_1 = arith.constant 0 : index
    %c0_2 = arith.constant 0 : index
    %1 = vector.load %arg1[%c0_1, %c0_2] : memref<128x128xf32, #tpu.memory_space<vmem>>, vector<128x128xf32>
    %cst = arith.constant dense<0.000000e+00> : vector<16x128xf32>
    %2 = tpu.matmul %0, %1, %cst {dimension_numbers = #tpu.dot_dimension_numbers<[1], [0], [0], [1], [0, 0, 1, 1], [], []>} : vector<16x128xf32>, vector<128x128xf32>, vector<16x128xf32> -> vector<16x128xf32>
    %c0_3 = arith.constant 0 : index
    %c0_4 = arith.constant 0 : index
    %3 = vector.load %arg2[%c0_3, %c0_4] : memref<1x128xf32, #tpu.memory_space<vmem>>, vector<1x128xf32>
    %4 = vector.broadcast %3 : vector<1x128xf32> to vector<16x128xf32>
    %5 = arith.addf %2, %4 : vector<16x128xf32>
    %cst_5 = arith.constant 0.000000e+00 : f32
    %6 = vector.broadcast %cst_5 : f32 to vector<16x128xf32>
    %7 = arith.maximumf %5, %6 : vector<16x128xf32>
    %c0_6 = arith.constant 0 : index
    %c0_7 = arith.constant 0 : index
    %8 = vector.load %arg3[%c0_6, %c0_7] : memref<128x128xf32, #tpu.memory_space<vmem>>, vector<128x128xf32>
    %cst_8 = arith.constant dense<0.000000e+00> : vector<16x128xf32>
    %9 = tpu.matmul %7, %8, %cst_8 {dimension_numbers = #tpu.dot_dimension_numbers<[1], [0], [0], [1], [0, 0, 1, 1], [], []>} : vector<16x128xf32>, vector<128x128xf32>, vector<16x128xf32> -> vector<16x128xf32>
    %c0_9 = arith.constant 0 : index
    %c0_10 = arith.constant 0 : index
    %10 = vector.load %arg4[%c0_9, %c0_10] : memref<1x128xf32, #tpu.memory_space<vmem>>, vector<1x128xf32>
    %11 = vector.broadcast %10 : vector<1x128xf32> to vector<16x128xf32>
    %12 = arith.addf %9, %11 : vector<16x128xf32>
    %cst_11 = arith.constant dense<0.000000e+00> : vector<128xf32>
    %13 = vector.multi_reduction <add>, %12, %cst_11 [0] : vector<16x128xf32> to vector<128xf32>
    %14 = vector.shape_cast %13 : vector<128xf32> to vector<1x128xf32>
    %cst_12 = arith.constant 1.600000e+01 : f32
    %15 = vector.broadcast %cst_12 : f32 to vector<1x128xf32>
    %16 = arith.divf %14, %15 : vector<1x128xf32>
    %17 = vector.broadcast %16 : vector<1x128xf32> to vector<16x128xf32>
    %18 = arith.subf %12, %17 : vector<16x128xf32>
    %19 = arith.mulf %18, %18 : vector<16x128xf32>
    %cst_13 = arith.constant dense<0.000000e+00> : vector<128xf32>
    %20 = vector.multi_reduction <add>, %19, %cst_13 [0] : vector<16x128xf32> to vector<128xf32>
    %21 = vector.shape_cast %20 : vector<128xf32> to vector<1x128xf32>
    %cst_14 = arith.constant 0.0666666701 : f32
    %22 = vector.broadcast %cst_14 : f32 to vector<1x128xf32>
    %23 = arith.mulf %21, %22 : vector<1x128xf32>
    %cst_15 = arith.constant 9.99999974E-6 : f32
    %24 = vector.broadcast %cst_15 : f32 to vector<1x128xf32>
    %25 = arith.addf %23, %24 : vector<1x128xf32>
    %26 = tpu.reciprocal %25 : vector<1x128xf32> -> vector<1x128xf32>
    %27 = vector.broadcast %26 : vector<1x128xf32> to vector<16x128xf32>
    %28 = arith.mulf %18, %27 : vector<16x128xf32>
    %cst_16 = arith.constant 0.000000e+00 : f32
    %29 = vector.broadcast %cst_16 : f32 to vector<16x128xf32>
    %30 = arith.maximumf %28, %29 : vector<16x128xf32>
    %cst_17 = arith.constant dense<0.000000e+00> : vector<128xf32>
    %31 = vector.multi_reduction <add>, %30, %cst_17 [0] : vector<16x128xf32> to vector<128xf32>
    %32 = vector.shape_cast %31 : vector<128xf32> to vector<1x128xf32>
    %cst_18 = arith.constant 1.600000e+01 : f32
    %33 = vector.broadcast %cst_18 : f32 to vector<1x128xf32>
    %34 = arith.divf %32, %33 : vector<1x128xf32>
    %35 = vector.broadcast %34 : vector<1x128xf32> to vector<16x128xf32>
    %36 = arith.subf %30, %35 : vector<16x128xf32>
    %37 = arith.mulf %36, %36 : vector<16x128xf32>
    %cst_19 = arith.constant dense<0.000000e+00> : vector<128xf32>
    %38 = vector.multi_reduction <add>, %37, %cst_19 [0] : vector<16x128xf32> to vector<128xf32>
    %39 = vector.shape_cast %38 : vector<128xf32> to vector<1x128xf32>
    %cst_20 = arith.constant 0.0666666701 : f32
    %40 = vector.broadcast %cst_20 : f32 to vector<1x128xf32>
    %41 = arith.mulf %39, %40 : vector<1x128xf32>
    %cst_21 = arith.constant 9.99999974E-6 : f32
    %42 = vector.broadcast %cst_21 : f32 to vector<1x128xf32>
    %43 = arith.addf %41, %42 : vector<1x128xf32>
    %44 = tpu.reciprocal %43 : vector<1x128xf32> -> vector<1x128xf32>
    %45 = vector.broadcast %44 : vector<1x128xf32> to vector<16x128xf32>
    %46 = arith.mulf %36, %45 : vector<16x128xf32>
    %c0_22 = arith.constant 0 : index
    %c0_23 = arith.constant 0 : index
    %47 = vector.load %arg5[%c0_22, %c0_23] : memref<128x128xf32, #tpu.memory_space<vmem>>, vector<128x128xf32>
    %cst_24 = arith.constant dense<0.000000e+00> : vector<16x128xf32>
    %48 = tpu.matmul %46, %47, %cst_24 {dimension_numbers = #tpu.dot_dimension_numbers<[1], [0], [0], [1], [0, 0, 1, 1], [], []>} : vector<16x128xf32>, vector<128x128xf32>, vector<16x128xf32> -> vector<16x128xf32>
    %c0_25 = arith.constant 0 : index
    %c0_26 = arith.constant 0 : index
    %49 = vector.load %arg6[%c0_25, %c0_26] : memref<1x128xf32, #tpu.memory_space<vmem>>, vector<1x128xf32>
    %50 = vector.broadcast %49 : vector<1x128xf32> to vector<16x128xf32>
    %51 = arith.addf %48, %50 : vector<16x128xf32>
    %cst_27 = arith.constant 0.000000e+00 : f32
    %52 = vector.broadcast %cst_27 : f32 to vector<16x128xf32>
    %53 = arith.maximumf %51, %52 : vector<16x128xf32>
    %54 = arith.mulf %53, %53 : vector<16x128xf32>
    %cst_28 = arith.constant dense<0.000000e+00> : vector<16xf32>
    %55 = vector.multi_reduction <add>, %54, %cst_28 [1] : vector<16x128xf32> to vector<16xf32>
    %56 = vector.shape_cast %55 : vector<16xf32> to vector<16x1xf32>
    %cst_29 = arith.constant 1.000000e-30 : f32
    %57 = vector.broadcast %cst_29 : f32 to vector<16x1xf32>
    %58 = arith.maximumf %56, %57 : vector<16x1xf32>
    %59 = math.rsqrt %58 : vector<16x1xf32>
    %60 = vector.broadcast %59 : vector<16x1xf32> to vector<16x128xf32>
    %61 = arith.mulf %53, %60 : vector<16x128xf32>
    %62 = tpu.transpose %61, [1, 0] : vector<16x128xf32> -> vector<128x16xf32>
    %cst_30 = arith.constant 0.000000e+00 : f32
    %63 = vector.broadcast %cst_30 : f32 to vector<128x128xf32>
    %c0_31 = arith.constant 0 : index
    %c0_32 = arith.constant 0 : index
    %64 = vector.load %arg7[%c0_31, %c0_32] : memref<128x128xf32, #tpu.memory_space<vmem>>, vector<128x128xf32>
    tpu.vector_store %arg7[%c0_31, %c0_32], %63 {strides = array<i32>} : memref<128x128xf32, #tpu.memory_space<vmem>>, vector<128x128xf32>,
    %c0_33 = arith.constant 0 : index
    %c0_34 = arith.constant 0 : index
    %65 = vector.load %arg7[%c0_33, %c0_34] : memref<128x128xf32, #tpu.memory_space<vmem>>, vector<128x16xf32>
    tpu.vector_store %arg7[%c0_33, %c0_34], %62 {strides = array<i32>} : memref<128x128xf32, #tpu.memory_space<vmem>>, vector<128x16xf32>,
    return
  }
}

module attributes {stable_mosaic.version = 11 : i64} {
  func.func @_protos_kernel(%arg0: memref<16x128xf32, #tpu.memory_space<vmem>>, %arg1: memref<128x128xf32, #tpu.memory_space<vmem>>, %arg2: memref<1x128xf32, #tpu.memory_space<vmem>>, %arg3: memref<128x128xf32, #tpu.memory_space<vmem>>, %arg4: memref<1x128xf32, #tpu.memory_space<vmem>>, %arg5: memref<128x128xf32, #tpu.memory_space<vmem>>, %arg6: memref<1x128xf32, #tpu.memory_space<vmem>>, %arg7: memref<16x128xf32, #tpu.memory_space<vmem>>) attributes {dimension_semantics = [], scalar_prefetch = 0 : i64, scratch_operands = 0 : i64, tpu.core_type = #tpu.core_type<tc>} {
    %c0 = arith.constant 0 : index
    %c0_0 = arith.constant 0 : index
    %0 = vector.load %arg0[%c0, %c0_0] : memref<16x128xf32, #tpu.memory_space<vmem>>, vector<16x128xf32>
    %c0_1 = arith.constant 0 : index
    %c0_2 = arith.constant 0 : index
    %1 = vector.load %arg1[%c0_1, %c0_2] : memref<128x128xf32, #tpu.memory_space<vmem>>, vector<128x128xf32>
    %cst = arith.constant dense<0.000000e+00> : vector<16x128xf32>
    %2 = tpu.matmul %0, %1, %cst {dimension_numbers = #tpu.dot_dimension_numbers<[1], [0], [0], [1], [0, 0, 1, 1], [], []>} : vector<16x128xf32>, vector<128x128xf32>, vector<16x128xf32> -> vector<16x128xf32>
    %c0_3 = arith.constant 0 : index
    %c0_4 = arith.constant 0 : index
    %3 = vector.load %arg2[%c0_3, %c0_4] : memref<1x128xf32, #tpu.memory_space<vmem>>, vector<1x128xf32>
    %4 = vector.broadcast %3 : vector<1x128xf32> to vector<16x128xf32>
    %5 = arith.addf %2, %4 : vector<16x128xf32>
    %cst_5 = arith.constant 0.000000e+00 : f32
    %6 = vector.broadcast %cst_5 : f32 to vector<16x128xf32>
    %7 = arith.maximumf %5, %6 : vector<16x128xf32>
    %c0_6 = arith.constant 0 : index
    %c0_7 = arith.constant 0 : index
    %8 = vector.load %arg3[%c0_6, %c0_7] : memref<128x128xf32, #tpu.memory_space<vmem>>, vector<128x128xf32>
    %cst_8 = arith.constant dense<0.000000e+00> : vector<16x128xf32>
    %9 = tpu.matmul %7, %8, %cst_8 {dimension_numbers = #tpu.dot_dimension_numbers<[1], [0], [0], [1], [0, 0, 1, 1], [], []>} : vector<16x128xf32>, vector<128x128xf32>, vector<16x128xf32> -> vector<16x128xf32>
    %c0_9 = arith.constant 0 : index
    %c0_10 = arith.constant 0 : index
    %10 = vector.load %arg4[%c0_9, %c0_10] : memref<1x128xf32, #tpu.memory_space<vmem>>, vector<1x128xf32>
    %11 = vector.broadcast %10 : vector<1x128xf32> to vector<16x128xf32>
    %12 = arith.addf %9, %11 : vector<16x128xf32>
    %cst_11 = arith.constant dense<0.000000e+00> : vector<128xf32>
    %13 = vector.multi_reduction <add>, %12, %cst_11 [0] : vector<16x128xf32> to vector<128xf32>
    %14 = vector.shape_cast %13 : vector<128xf32> to vector<1x128xf32>
    %cst_12 = arith.constant 1.600000e+01 : f32
    %15 = vector.broadcast %cst_12 : f32 to vector<1x128xf32>
    %16 = arith.divf %14, %15 : vector<1x128xf32>
    %17 = vector.broadcast %16 : vector<1x128xf32> to vector<16x128xf32>
    %18 = arith.subf %12, %17 : vector<16x128xf32>
    %19 = arith.mulf %18, %18 : vector<16x128xf32>
    %cst_13 = arith.constant dense<0.000000e+00> : vector<128xf32>
    %20 = vector.multi_reduction <add>, %19, %cst_13 [0] : vector<16x128xf32> to vector<128xf32>
    %21 = vector.shape_cast %20 : vector<128xf32> to vector<1x128xf32>
    %cst_14 = arith.constant 0.0666666701 : f32
    %22 = vector.broadcast %cst_14 : f32 to vector<1x128xf32>
    %23 = arith.mulf %21, %22 : vector<1x128xf32>
    %cst_15 = arith.constant 9.99999974E-6 : f32
    %24 = vector.broadcast %cst_15 : f32 to vector<1x128xf32>
    %25 = arith.addf %23, %24 : vector<1x128xf32>
    %26 = tpu.reciprocal %25 : vector<1x128xf32> -> vector<1x128xf32>
    %27 = vector.broadcast %26 : vector<1x128xf32> to vector<16x128xf32>
    %28 = arith.mulf %18, %27 : vector<16x128xf32>
    %cst_16 = arith.constant 0.000000e+00 : f32
    %29 = vector.broadcast %cst_16 : f32 to vector<16x128xf32>
    %30 = arith.maximumf %28, %29 : vector<16x128xf32>
    %cst_17 = arith.constant dense<0.000000e+00> : vector<128xf32>
    %31 = vector.multi_reduction <add>, %30, %cst_17 [0] : vector<16x128xf32> to vector<128xf32>
    %32 = vector.shape_cast %31 : vector<128xf32> to vector<1x128xf32>
    %cst_18 = arith.constant 1.600000e+01 : f32
    %33 = vector.broadcast %cst_18 : f32 to vector<1x128xf32>
    %34 = arith.divf %32, %33 : vector<1x128xf32>
    %35 = vector.broadcast %34 : vector<1x128xf32> to vector<16x128xf32>
    %36 = arith.subf %30, %35 : vector<16x128xf32>
    %37 = arith.mulf %36, %36 : vector<16x128xf32>
    %cst_19 = arith.constant dense<0.000000e+00> : vector<128xf32>
    %38 = vector.multi_reduction <add>, %37, %cst_19 [0] : vector<16x128xf32> to vector<128xf32>
    %39 = vector.shape_cast %38 : vector<128xf32> to vector<1x128xf32>
    %cst_20 = arith.constant 0.0666666701 : f32
    %40 = vector.broadcast %cst_20 : f32 to vector<1x128xf32>
    %41 = arith.mulf %39, %40 : vector<1x128xf32>
    %cst_21 = arith.constant 9.99999974E-6 : f32
    %42 = vector.broadcast %cst_21 : f32 to vector<1x128xf32>
    %43 = arith.addf %41, %42 : vector<1x128xf32>
    %44 = tpu.reciprocal %43 : vector<1x128xf32> -> vector<1x128xf32>
    %45 = vector.broadcast %44 : vector<1x128xf32> to vector<16x128xf32>
    %46 = arith.mulf %36, %45 : vector<16x128xf32>
    %c0_22 = arith.constant 0 : index
    %c0_23 = arith.constant 0 : index
    %47 = vector.load %arg5[%c0_22, %c0_23] : memref<128x128xf32, #tpu.memory_space<vmem>>, vector<128x128xf32>
    %cst_24 = arith.constant dense<0.000000e+00> : vector<16x128xf32>
    %48 = tpu.matmul %46, %47, %cst_24 {dimension_numbers = #tpu.dot_dimension_numbers<[1], [0], [0], [1], [0, 0, 1, 1], [], []>} : vector<16x128xf32>, vector<128x128xf32>, vector<16x128xf32> -> vector<16x128xf32>
    %c0_25 = arith.constant 0 : index
    %c0_26 = arith.constant 0 : index
    %49 = vector.load %arg6[%c0_25, %c0_26] : memref<1x128xf32, #tpu.memory_space<vmem>>, vector<1x128xf32>
    %50 = vector.broadcast %49 : vector<1x128xf32> to vector<16x128xf32>
    %51 = arith.addf %48, %50 : vector<16x128xf32>
    %cst_27 = arith.constant 0.000000e+00 : f32
    %52 = vector.broadcast %cst_27 : f32 to vector<16x128xf32>
    %53 = arith.maximumf %51, %52 : vector<16x128xf32>
    %54 = arith.mulf %53, %53 : vector<16x128xf32>
    %cst_28 = arith.constant dense<0.000000e+00> : vector<16xf32>
    %55 = vector.multi_reduction <add>, %54, %cst_28 [1] : vector<16x128xf32> to vector<16xf32>
    %56 = vector.shape_cast %55 : vector<16xf32> to vector<16x1xf32>
    %cst_29 = arith.constant 1.000000e-30 : f32
    %57 = vector.broadcast %cst_29 : f32 to vector<16x1xf32>
    %58 = arith.maximumf %56, %57 : vector<16x1xf32>
    %59 = math.rsqrt %58 : vector<16x1xf32>
    %60 = vector.broadcast %59 : vector<16x1xf32> to vector<16x128xf32>
    %61 = arith.mulf %53, %60 : vector<16x128xf32>
    %c0_30 = arith.constant 0 : index
    %c0_31 = arith.constant 0 : index
    %62 = vector.load %arg7[%c0_30, %c0_31] : memref<16x128xf32, #tpu.memory_space<vmem>>, vector<16x128xf32>
    tpu.vector_store %arg7[%c0_30, %c0_31], %61 {strides = array<i32>} : memref<16x128xf32, #tpu.memory_space<vmem>>, vector<16x128xf32>,
    return
  }
}

</mosaic_0001>

<llo_original>
// kernel: tpu_custom_call.1
$region0: #{tpu_custom_call.1}
  #allocation0 [shape = 'u32[]', space=smem, size = 0x4, offset = 0x4, fixed_abs, tag = 'smem constant byte address 0x4 - core index']
  #allocation1 [shape = 'u32[72,128]{1,0:T(1,128)}', space=vmem, size = 0x9000, scoped, tag = 'internal scratch']
  %s0 = inlined_call_operand.hbm [shape: f32[16,128], index: 0, kind: input, shape index: {}]
  %s1 = inlined_call_operand.hbm [shape: f32[128,128], index: 1, kind: input, shape index: {}]
  %s2 = inlined_call_operand.vmem [shape: f32[1,128], index: 2, kind: input, shape index: {}]
  %s3 = inlined_call_operand.hbm [shape: f32[128,128], index: 3, kind: input, shape index: {}]
  %s4 = inlined_call_operand.vmem [shape: f32[1,128], index: 4, kind: input, shape index: {}]
  %s5 = inlined_call_operand.hbm [shape: f32[128,128], index: 5, kind: input, shape index: {}]
  %s6 = inlined_call_operand.vmem [shape: f32[1,128], index: 6, kind: input, shape index: {}]
  %s7 = inlined_call_operand.hbm [shape: f32[128,128], index: 7, kind: output, shape index: {}]
  %s8 = sld [smem:[#allocation0]]
  $region54: #{tpu_custom_call.1} parent=0
    _
  %s10 = ssub.s32 1, %s8
  %s11 = scalar_select 0, %s10, %s8
  $region1: #{tpu_custom_call.1} parent=0
    #allocation2 [shape = 'u8[8192]{0}', space=vmem, size = 0x2000, scoped, tag = 'input window, operand 0, single buffered']
    #allocation3 [shape = 's32[1]{0}', space=sflag, size = 0x4, scoped, tag = 'scoped memory for tpu_custom_call.1']
    #allocation4 [shape = 's32[1]{0}', space=sflag, size = 0x4, scoped, tag = 'scoped memory for tpu_custom_call.1']
    #allocation5 [shape = 'u8[65536]{0}', space=vmem, size = 0x10000, scoped, tag = 'input window, operand 1, single buffered']
    #allocation6 [shape = 's32[1]{0}', space=sflag, size = 0x4, scoped, tag = 'scoped memory for tpu_custom_call.1']
    #allocation7 [shape = 'u8[65536]{0}', space=vmem, size = 0x10000, scoped, tag = 'input window, operand 3, single buffered']
    #allocation8 [shape = 'u8[65536]{0}', space=vmem, size = 0x10000, scoped, tag = 'input window, operand 5, single buffered']
    #allocation9 [shape = 's32[1]{0}', space=sflag, size = 0x4, scoped, tag = 'scoped memory for tpu_custom_call.1']
    #allocation10 [shape = 'u8[65536]{0}', space=vmem, size = 0x10000, scoped, tag = 'output window, operand 0, single buffered']
    %12 = vsyncpa [#allocation3], 0
    %13 = vsyncpa [#allocation6], 0
    %14 = vsyncpa [#allocation9], 0
    %15 = vsyncpa [#allocation4], 0
    // Predicated region
    $region2: #{tpu_custom_call.1} parent=1 // pred_check
      _
    $region3: #{tpu_custom_call.1} parent=1 // pred_check_branch
      %17 = sbr.rel (0) target = $region5
    $region4: #{tpu_custom_call.1} parent=1 // pred_region
      %19 = vsyncadd [#allocation3], 0
      %s20 = sshll.u32 %s0, 4
      %s21 = int_to_ptr.hbm [resolvable:$true] %s20
      %s22 = sshll.u32 [#allocation2], 4
      %s23 = int_to_ptr.vmem [resolvable:$true] %s22
      %28 = dma.hbm_to_vmem [thread:$0]  %s21, 256, %s23, [#allocation3], 128, 128, 8
    $region5: #{tpu_custom_call.1} parent=1 // pred_fallthru
      _
    // Predicated region
    $region6: #{tpu_custom_call.1} parent=1 // pred_check
      _
    $region7: #{tpu_custom_call.1} parent=1 // pred_check_branch
      %30 = sbr.rel (0) target = $region9
    $region8: #{tpu_custom_call.1} parent=1 // pred_region
      %32 = vsyncadd [#allocation6], 0
      %s33 = sshll.u32 %s1, 4
      %s34 = int_to_ptr.hbm [resolvable:$true] %s33
      %s35 = sshll.u32 [#allocation5], 4
      %s36 = int_to_ptr.vmem [resolvable:$true] %s35
      %41 = dma.hbm_to_vmem [thread:$0]  %s34, 2048, %s36, [#allocation6], 128, 128, 8
    $region9: #{tpu_custom_call.1} parent=1 // pred_fallthru
      _
    // Predicated region
    $region10: #{tpu_custom_call.1} parent=1 // pred_check
      _
    $region11: #{tpu_custom_call.1} parent=1 // pred_check_branch
      %43 = sbr.rel (0) target = $region13
    $region12: #{tpu_custom_call.1} parent=1 // pred_region
      _
    $region13: #{tpu_custom_call.1} parent=1 // pred_fallthru
      _
    // Predicated region
    $region14: #{tpu_custom_call.1} parent=1 // pred_check
      _
    $region15: #{tpu_custom_call.1} parent=1 // pred_check_branch
      %45 = sbr.rel (0) target = $region17
    $region16: #{tpu_custom_call.1} parent=1 // pred_region
      %47 = vsyncadd [#allocation6], 0
      %s48 = sshll.u32 %s3, 4
      %s49 = int_to_ptr.hbm [resolvable:$true] %s48
      %s50 = sshll.u32 [#allocation7], 4
      %s51 = int_to_ptr.vmem [resolvable:$true] %s50
      %56 = dma.hbm_to_vmem [thread:$0]  %s49, 2048, %s51, [#allocation6], 128, 128, 8
    $region17: #{tpu_custom_call.1} parent=1 // pred_fallthru
      _
    // Predicated region
    $region18: #{tpu_custom_call.1} parent=1 // pred_check
      _
    $region19: #{tpu_custom_call.1} parent=1 // pred_check_branch
      %58 = sbr.rel (0) target = $region21
    $region20: #{tpu_custom_call.1} parent=1 // pred_region
      _
    $region21: #{tpu_custom_call.1} parent=1 // pred_fallthru
      _
    // Predicated region
    $region22: #{tpu_custom_call.1} parent=1 // pred_check
      _
    $region23: #{tpu_custom_call.1} parent=1 // pred_check_branch
      %60 = sbr.rel (0) target = $region25
    $region24: #{tpu_custom_call.1} parent=1 // pred_region
      %62 = vsyncadd [#allocation9], 0
      %s63 = sshll.u32 %s5, 4
      %s64 = int_to_ptr.hbm [resolvable:$true] %s63
      %s65 = sshll.u32 [#allocation8], 4
      %s66 = int_to_ptr.vmem [resolvable:$true] %s65
      %71 = dma.hbm_to_vmem [thread:$0]  %s64, 2048, %s66, [#allocation9], 128, 128, 8
    $region25: #{tpu_custom_call.1} parent=1 // pred_fallthru
      _
    // Predicated region
    $region26: #{tpu_custom_call.1} parent=1 // pred_check
      _
    $region27: #{tpu_custom_call.1} parent=1 // pred_check_branch
      %73 = sbr.rel (0) target = $region29
    $region28: #{tpu_custom_call.1} parent=1 // pred_region
      _
    $region29: #{tpu_custom_call.1} parent=1 // pred_fallthru
      _
    // Predicated region
    $region30: #{tpu_custom_call.1} parent=1 // pred_check
      _
    $region31: #{tpu_custom_call.1} parent=1 // pred_check_branch
      %75 = sbr.rel (0) target = $region33
    $region32: #{tpu_custom_call.1} parent=1 // pred_region
      %77 = dma.done [#allocation3], 256
    $region33: #{tpu_custom_call.1} parent=1 // pred_fallthru
      _
    // Predicated region
    $region34: #{tpu_custom_call.1} parent=1 // pred_check
      _
    $region35: #{tpu_custom_call.1} parent=1 // pred_check_branch
      %79 = sbr.rel (0) target = $region37
    $region36: #{tpu_custom_call.1} parent=1 // pred_region
      %81 = dma.done [#allocation6], 2048
    $region37: #{tpu_custom_call.1} parent=1 // pred_fallthru
      _
    // Predicated region
    $region38: #{tpu_custom_call.1} parent=1 // pred_check
      _
    $region39: #{tpu_custom_call.1} parent=1 // pred_check_branch
      %83 = sbr.rel (0) target = $region41
    $region40: #{tpu_custom_call.1} parent=1 // pred_region
      %85 = dma.done [#allocation6], 2048
    $region41: #{tpu_custom_call.1} parent=1 // pred_fallthru
      _
    // Predicated region
    $region42: #{tpu_custom_call.1} parent=1 // pred_check
      _
    $region43: #{tpu_custom_call.1} parent=1 // pred_check_branch
      %87 = sbr.rel (0) target = $region45
    $region44: #{tpu_custom_call.1} parent=1 // pred_region
      %89 = dma.done [#allocation9], 2048
    $region45: #{tpu_custom_call.1} parent=1 // pred_fallthru
      _
    %v90 = vld [vmem:[#allocation2] sm:$0xff]
    %v91 = vld [vmem:[#allocation2 + $0x8] sm:$0xff]
    %v92 = vld [vmem:[#allocation5] sm:$0xff]
    %v93 = vld [vmem:[#allocation5 + $0x8] sm:$0xff]
    %v94 = vld [vmem:[#allocation5 + $0x10] sm:$0xff]
    %v95 = vld [vmem:[#allocation5 + $0x18] sm:$0xff]
    %v96 = vld [vmem:[#allocation5 + $0x20] sm:$0xff]
    %v97 = vld [vmem:[#allocation5 + $0x28] sm:$0xff]
    %v98 = vld [vmem:[#allocation5 + $0x30] sm:$0xff]
    %v99 = vld [vmem:[#allocation5 + $0x38] sm:$0xff]
    %v100 = vld [vmem:[#allocation5 + $0x40] sm:$0xff]
    %v101 = vld [vmem:[#allocation5 + $0x48] sm:$0xff]
    %v102 = vld [vmem:[#allocation5 + $0x50] sm:$0xff]
    %v103 = vld [vmem:[#allocation5 + $0x58] sm:$0xff]
    %v104 = vld [vmem:[#allocation5 + $0x60] sm:$0xff]
    %v105 = vld [vmem:[#allocation5 + $0x68] sm:$0xff]
    %v106 = vld [vmem:[#allocation5 + $0x70] sm:$0xff]
    %v107 = vld [vmem:[#allocation5 + $0x78] sm:$0xff]
    %v108 = vld [vmem:[%s2] sm:$0x1]
    %v110 = vperm.slane %v108, 0
    %112 = vmatpush.msra.mxu0 %v107
    %113 = vmatpush.msra.mxu0 %v106
    %114 = vmatpush.msra.mxu0 %v105
    %115 = vmatpush.msra.mxu0 %v104
    %116 = vmatpush.msra.mxu0 %v103
    %117 = vmatpush.msra.mxu0 %v102
    %118 = vmatpush.msra.mxu0 %v101
    %119 = vmatpush.msra.mxu0 %v100
    %120 = vmatpush.msra.mxu0 %v99
    %121 = vmatpush.msra.mxu0 %v98
    %122 = vmatpush.msra.mxu0 %v97
    %123 = vmatpush.msra.mxu0 %v96
    %124 = vmatpush.msra.mxu0 %v95
    %125 = vmatpush.msra.mxu0 %v94
    %126 = vmatpush.msra.mxu0 %v93
    %127 = vmatpush.msra.mxu0 %v92
    %128 = vmatmul.f32.gmra.mxu0 %v90
    %v129 = vpop.f32.mrf.mxu0
    %v130 = vadd.f32 %v110, %v129
    %131 = vmatmul.f32.gmra.mxu0 %v91
    %v132 = vpop.f32.mrf.mxu0
    %v133 = vadd.f32 %v110, %v132
    %134 = vdwg.mxu0
    %v135 = vmax.f32 %v130, 0.0
    %v136 = vmax.f32 %v133, 0.0
    %v137 = vld [vmem:[#allocation7] sm:$0xff]
    %v138 = vld [vmem:[#allocation7 + $0x8] sm:$0xff]
    %v139 = vld [vmem:[#allocation7 + $0x10] sm:$0xff]
    %v140 = vld [vmem:[#allocation7 + $0x18] sm:$0xff]
    %v141 = vld [vmem:[#allocation7 + $0x20] sm:$0xff]
    %v142 = vld [vmem:[#allocation7 + $0x28] sm:$0xff]
    %v143 = vld [vmem:[#allocation7 + $0x30] sm:$0xff]
    %v144 = vld [vmem:[#allocation7 + $0x38] sm:$0xff]
    %v145 = vld [vmem:[#allocation7 + $0x40] sm:$0xff]
    %v146 = vld [vmem:[#allocation7 + $0x48] sm:$0xff]
    %v147 = vld [vmem:[#allocation7 + $0x50] sm:$0xff]
    %v148 = vld [vmem:[#allocation7 + $0x58] sm:$0xff]
    %v149 = vld [vmem:[#allocation7 + $0x60] sm:$0xff]
    %v150 = vld [vmem:[#allocation7 + $0x68] sm:$0xff]
    %v151 = vld [vmem:[#allocation7 + $0x70] sm:$0xff]
    %v152 = vld [vmem:[#allocation7 + $0x78] sm:$0xff]
    %v153 = vld [vmem:[%s4] sm:$0x1]
    %v155 = vperm.slane %v153, 0
    %157 = vmatpush.msra.mxu0 %v152
    %158 = vmatpush.msra.mxu0 %v151
    %159 = vmatpush.msra.mxu0 %v150
    %160 = vmatpush.msra.mxu0 %v149
    %161 = vmatpush.msra.mxu0 %v148
    %162 = vmatpush.msra.mxu0 %v147
    %163 = vmatpush.msra.mxu0 %v146
    %164 = vmatpush.msra.mxu0 %v145
    %165 = vmatpush.msra.mxu0 %v144
    %166 = vmatpush.msra.mxu0 %v143
    %167 = vmatpush.msra.mxu0 %v142
    %168 = vmatpush.msra.mxu0 %v141
    %169 = vmatpush.msra.mxu0 %v140
    %170 = vmatpush.msra.mxu0 %v139
    %171 = vmatpush.msra.mxu0 %v138
    %172 = vmatpush.msra.mxu0 %v137
    %173 = vmatmul.f32.gmra.mxu0 %v135
    %v174 = vpop.f32.mrf.mxu0
    %v175 = vadd.f32 %v155, %v174
    %176 = vmatmul.f32.gmra.mxu0 %v136
    %v177 = vpop.f32.mrf.mxu0
    %v178 = vadd.f32 %v155, %v177
    %179 = vdwg.mxu0
    %v180 = vadd.f32 %v175, %v178
    %v181 = vrot.slane %v180, 4
    %v182 = vadd.f32 %v180, %v181
    %v183 = vrot.slane %v182, 2
    %v184 = vadd.f32 %v182, %v183
    %v185 = vrot.slane %v184, 1
    %v186 = vadd.f32 %v184, %v185
    %v187 = vrcp.pop 16.0
    %v188 = vmul.f32 16.0, %v187
    %v189 = vsub.f32 1.0, %v188
    %v190 = vmul.f32 %v187, %v189
    %v191 = vadd.f32 %v187, %v190
    %vm192 = vweird.f32 %v187
    %v193 = vsel %vm192, %v187, %v191
    %v194 = vmul.f32 %v186, %v193
    %v195 = vsub.f32 %v175, %v194
    %v196 = vsub.f32 %v178, %v194
    %v197 = vmul.f32 %v195, %v195
    %v198 = vmul.f32 %v196, %v196
    %v199 = vadd.f32 %v197, %v198
    %v200 = vrot.slane %v199, 4
    %v201 = vadd.f32 %v199, %v200
    %v202 = vrot.slane %v201, 2
    %v203 = vadd.f32 %v201, %v202
    %v204 = vrot.slane %v203, 1
    %v205 = vadd.f32 %v203, %v204
    %v206 = vmul.f32 %v205, 0.06666667
    %v207 = vadd.f32 %v206, 1e-05
    %v208 = vrcp.pop %v207
    %v209 = vmul.f32 %v207, %v208
    %v210 = vsub.f32 1.0, %v209
    %v211 = vmul.f32 %v208, %v210
    %v212 = vadd.f32 %v208, %v211
    %vm213 = vweird.f32 %v207
    %vm214 = vweird.f32 %v208
    %vm215 = vmor %vm213, %vm214
    %v216 = vsel %vm215, %v208, %v212
    %v217 = vand.u32 2147483647, %v207
    %vm218 = vcmp.eq.f32.partialorder %v217, 8.507059e+37
    %v219 = vand.u32 %v207, 2147483648
    %v220 = vor.u32 1.1754944e-38, %v219
    %v221 = vsel %vm218, %v220, %v216
    %v222 = vmul.f32 %v195, %v221
    %v223 = vmul.f32 %v196, %v221
    %v224 = vmax.f32 %v222, 0.0
    %v225 = vmax.f32 %v223, 0.0
    %v226 = vadd.f32 %v224, %v225
    %v227 = vrot.slane %v226, 4
    %v228 = vadd.f32 %v226, %v227
    %v229 = vrot.slane %v228, 2
    %v230 = vadd.f32 %v228, %v229
    %v231 = vrot.slane %v230, 1
    %v232 = vadd.f32 %v230, %v231
    %v233 = vmul.f32 %v232, %v193
    %v234 = vsub.f32 %v224, %v233
    %v235 = vsub.f32 %v225, %v233
    %v236 = vmul.f32 %v234, %v234
    %v237 = vmul.f32 %v235, %v235
    %v238 = vadd.f32 %v236, %v237
    %v239 = vrot.slane %v238, 4
    %v240 = vadd.f32 %v238, %v239
    %v241 = vrot.slane %v240, 2
    %v242 = vadd.f32 %v240, %v241
    %v243 = vrot.slane %v242, 1
    %v244 = vadd.f32 %v242, %v243
    %v245 = vmul.f32 %v244, 0.06666667
    %v246 = vadd.f32 %v245, 1e-05
    %v247 = vrcp.pop %v246
    %v248 = vmul.f32 %v246, %v247
    %v249 = vsub.f32 1.0, %v248
    %v250 = vmul.f32 %v247, %v249
    %v251 = vadd.f32 %v247, %v250
    %vm252 = vweird.f32 %v246
    %vm253 = vweird.f32 %v247
    %vm254 = vmor %vm252, %vm253
    %v255 = vsel %vm254, %v247, %v251
    %v256 = vand.u32 2147483647, %v246
    %vm257 = vcmp.eq.f32.partialorder %v256, 8.507059e+37
    %v258 = vand.u32 %v246, 2147483648
    %v259 = vor.u32 1.1754944e-38, %v258
    %v260 = vsel %vm257, %v259, %v255
    %v261 = vmul.f32 %v234, %v260
    %v262 = vmul.f32 %v235, %v260
    %v263 = vld [vmem:[#allocation8] sm:$0xff]
    %v264 = vld [vmem:[#allocation8 + $0x8] sm:$0xff]
    %v265 = vld [vmem:[#allocation8 + $0x10] sm:$0xff]
    %v266 = vld [vmem:[#allocation8 + $0x18] sm:$0xff]
    %v267 = vld [vmem:[#allocation8 + $0x20] sm:$0xff]
    %v268 = vld [vmem:[#allocation8 + $0x28] sm:$0xff]
    %v269 = vld [vmem:[#allocation8 + $0x30] sm:$0xff]
    %v270 = vld [vmem:[#allocation8 + $0x38] sm:$0xff]
    %v271 = vld [vmem:[#allocation8 + $0x40] sm:$0xff]
    %v272 = vld [vmem:[#allocation8 + $0x48] sm:$0xff]
    %v273 = vld [vmem:[#allocation8 + $0x50] sm:$0xff]
    %v274 = vld [vmem:[#allocation8 + $0x58] sm:$0xff]
    %v275 = vld [vmem:[#allocation8 + $0x60] sm:$0xff]
    %v276 = vld [vmem:[#allocation8 + $0x68] sm:$0xff]
    %v277 = vld [vmem:[#allocation8 + $0x70] sm:$0xff]
    %v278 = vld [vmem:[#allocation8 + $0x78] sm:$0xff]
    %v279 = vld [vmem:[%s6] sm:$0x1]
    %v281 = vperm.slane %v279, 0
    %283 = vmatpush.msra.mxu0 %v278
    %284 = vmatpush.msra.mxu0 %v277
    %285 = vmatpush.msra.mxu0 %v276
    %286 = vmatpush.msra.mxu0 %v275
    %287 = vmatpush.msra.mxu0 %v274
    %288 = vmatpush.msra.mxu0 %v273
    %289 = vmatpush.msra.mxu0 %v272
    %290 = vmatpush.msra.mxu0 %v271
    %291 = vmatpush.msra.mxu0 %v270
    %292 = vmatpush.msra.mxu0 %v269
    %293 = vmatpush.msra.mxu0 %v268
    %294 = vmatpush.msra.mxu0 %v267
    %295 = vmatpush.msra.mxu0 %v266
    %296 = vmatpush.msra.mxu0 %v265
    %297 = vmatpush.msra.mxu0 %v264
    %298 = vmatpush.msra.mxu0 %v263
    %299 = vmatmul.f32.gmra.mxu0 %v261
    %v300 = vpop.f32.mrf.mxu0
    %v301 = vadd.f32 %v281, %v300
    %302 = vmatmul.f32.gmra.mxu0 %v262
    %v303 = vpop.f32.mrf.mxu0
    %v304 = vadd.f32 %v281, %v303
    %305 = vdwg.mxu0
    %v306 = vmax.f32 %v301, 0.0
    %v307 = vmax.f32 %v304, 0.0
    %v308 = vmul.f32 %v306, %v306
    %v309 = vmul.f32 %v307, %v307
    %310 = vadd.xlane.f32.xlu0 %v308
    %v311 = vpop.xlane.xlu0 %310
    %312 = vadd.xlane.f32.xlu0 %v309
    %v313 = vpop.xlane.xlu0 %312
    %v314 = vmax.f32 %v311, 1e-30
    %v315 = vmax.f32 %v313, 1e-30
    %v316 = vrsqrt.pop %v314
    %v317 = vmul.f32 %v316, %v314
    %v318 = vmul.f32 %v317, %v316
    %v319 = vmul.f32 0.5, %v318
    %v320 = vsub.f32 1.5, %v319
    %v321 = vmul.f32 %v316, %v320
    %vm322 = vweird.f32 %v314
    %vm323 = vweird.f32 %v316
    %vm324 = vmor %vm322, %vm323
    %v325 = vsel %vm324, %v316, %v321
    %v326 = vrsqrt.pop %v315
    %v327 = vmul.f32 %v326, %v315
    %v328 = vmul.f32 %v327, %v326
    %v329 = vmul.f32 0.5, %v328
    %v330 = vsub.f32 1.5, %v329
    %v331 = vmul.f32 %v326, %v330
    %vm332 = vweird.f32 %v315
    %vm333 = vweird.f32 %v326
    %vm334 = vmor %vm332, %vm333
    %v335 = vsel %vm334, %v326, %v331
    %v336 = vmul.f32 %v306, %v325
    %v337 = vmul.f32 %v307, %v335
    %338 = vxpose.xlu0.b32.start [1/16] %v336, 128
    %339 = vxpose.xlu0.b32.cont [2/16] %v337, 128
    %340 = vxpose.xlu0.b32.cont [3/16] 0.0, 128
    %341 = vxpose.xlu0.b32.cont [4/16] 0.0, 128
    %342 = vxpose.xlu0.b32.cont [5/16] 0.0, 128
    %343 = vxpose.xlu0.b32.cont [6/16] 0.0, 128
    %344 = vxpose.xlu0.b32.cont [7/16] 0.0, 128
    %345 = vxpose.xlu0.b32.cont [8/16] 0.0, 128
    %346 = vxpose.xlu0.b32.cont [9/16] 0.0, 128
    %347 = vxpose.xlu0.b32.cont [10/16] 0.0, 128
    %348 = vxpose.xlu0.b32.cont [11/16] 0.0, 128
    %349 = vxpose.xlu0.b32.cont [12/16] 0.0, 128
    %350 = vxpose.xlu0.b32.cont [13/16] 0.0, 128
    %351 = vxpose.xlu0.b32.cont [14/16] 0.0, 128
    %352 = vxpose.xlu0.b32.cont [15/16] 0.0, 128
    %353 = vxpose.xlu0.b32.end [16/16] 0.0, 128
    %v354 = vpop.trf.xlu0
    %v355 = vpop.trf.xlu0
    %v356 = vpop.trf.xlu0
    %v357 = vpop.trf.xlu0
    %v358 = vpop.trf.xlu0
    %v359 = vpop.trf.xlu0
    %v360 = vpop.trf.xlu0
    %v361 = vpop.trf.xlu0
    %v362 = vpop.trf.xlu0
    %v363 = vpop.trf.xlu0
    %v364 = vpop.trf.xlu0
    %v365 = vpop.trf.xlu0
    %v366 = vpop.trf.xlu0
    %v367 = vpop.trf.xlu0
    %v368 = vpop.trf.xlu0
    %v369 = vpop.trf.xlu0
    %370 = vst [vmem:[#allocation10] sm:$0xff] 0.0
    %371 = vst [vmem:[#allocation10 + $0x8] sm:$0xff] 0.0
    %372 = vst [vmem:[#allocation10 + $0x10] sm:$0xff] 0.0
    %373 = vst [vmem:[#allocation10 + $0x18] sm:$0xff] 0.0
    %374 = vst [vmem:[#allocation10 + $0x20] sm:$0xff] 0.0
    %375 = vst [vmem:[#allocation10 + $0x28] sm:$0xff] 0.0
    %376 = vst [vmem:[#allocation10 + $0x30] sm:$0xff] 0.0
    %377 = vst [vmem:[#allocation10 + $0x38] sm:$0xff] 0.0
    %378 = vst [vmem:[#allocation10 + $0x40] sm:$0xff] 0.0
    %379 = vst [vmem:[#allocation10 + $0x48] sm:$0xff] 0.0
    %380 = vst [vmem:[#allocation10 + $0x50] sm:$0xff] 0.0
    %381 = vst [vmem:[#allocation10 + $0x58] sm:$0xff] 0.0
    %382 = vst [vmem:[#allocation10 + $0x60] sm:$0xff] 0.0
    %383 = vst [vmem:[#allocation10 + $0x68] sm:$0xff] 0.0
    %384 = vst [vmem:[#allocation10 + $0x70] sm:$0xff] 0.0
    %385 = vst [vmem:[#allocation10 + $0x78] sm:$0xff] 0.0
    %vm386 = vcmask 130048
    %387 = vst.msk [vmem:[#allocation10] sm:$0xff] %vm386, %v354
    %388 = vst.msk [vmem:[#allocation10 + $0x8] sm:$0xff] %vm386, %v355
    %389 = vst.msk [vmem:[#allocation10 + $0x10] sm:$0xff] %vm386, %v356
    %390 = vst.msk [vmem:[#allocation10 + $0x18] sm:$0xff] %vm386, %v357
    %391 = vst.msk [vmem:[#allocation10 + $0x20] sm:$0xff] %vm386, %v358
    %392 = vst.msk [vmem:[#allocation10 + $0x28] sm:$0xff] %vm386, %v359
    %393 = vst.msk [vmem:[#allocation10 + $0x30] sm:$0xff] %vm386, %v360
    %394 = vst.msk [vmem:[#allocation10 + $0x38] sm:$0xff] %vm386, %v361
    %395 = vst.msk [vmem:[#allocation10 + $0x40] sm:$0xff] %vm386, %v362
    %396 = vst.msk [vmem:[#allocation10 + $0x48] sm:$0xff] %vm386, %v363
    %397 = vst.msk [vmem:[#allocation10 + $0x50] sm:$0xff] %vm386, %v364
    %398 = vst.msk [vmem:[#allocation10 + $0x58] sm:$0xff] %vm386, %v365
    %399 = vst.msk [vmem:[#allocation10 + $0x60] sm:$0xff] %vm386, %v366
    %400 = vst.msk [vmem:[#allocation10 + $0x68] sm:$0xff] %vm386, %v367
    %401 = vst.msk [vmem:[#allocation10 + $0x70] sm:$0xff] %vm386, %v368
    %402 = vst.msk [vmem:[#allocation10 + $0x78] sm:$0xff] %vm386, %v369
    // Predicated region
    $region46: #{tpu_custom_call.1} parent=1 // pred_check
      _
    $region47: #{tpu_custom_call.1} parent=1 // pred_check_branch
      %404 = sbr.rel (0) target = $region49
    $region48: #{tpu_custom_call.1} parent=1 // pred_region
      %406 = vsyncadd [#allocation4], 0
      %s407 = sshll.u32 [#allocation10], 4
      %s408 = int_to_ptr.vmem [resolvable:$true] %s407
      %s409 = sshll.u32 %s7, 4
      %s410 = int_to_ptr.hbm [resolvable:$true] %s409
      %415 = dma.vmem_to_hbm [thread:$0]  %s408, 2048, %s410, [#allocation4], 128, 128, 8
    $region49: #{tpu_custom_call.1} parent=1 // pred_fallthru
      _
    // Predicated region
    $region50: #{tpu_custom_call.1} parent=1 // pred_check
      _
    $region51: #{tpu_custom_call.1} parent=1 // pred_check_branch
      %417 = sbr.rel (0) target = $region53
    $region52: #{tpu_custom_call.1} parent=1 // pred_region
      %419 = dma.done [#allocation4], 2048
    $region53: #{tpu_custom_call.1} parent=1 // pred_fallthru
      _
    %420 = vsyncpa [#allocation3], 1
    %421 = vsyncpa [#allocation6], 1
    %422 = vsyncpa [#allocation9], 1
    %423 = vsyncpa [#allocation4], 1

// kernel: tpu_custom_call.1
$region0: #{tpu_custom_call.1}
  #allocation0 [shape = 'u32[]', space=smem, size = 0x4, offset = 0x4, fixed_abs, tag = 'smem constant byte address 0x4 - core index']
  #allocation1 [shape = 'u32[72,128]{1,0:T(1,128)}', space=vmem, size = 0x9000, scoped, tag = 'internal scratch']
  %s0 = inlined_call_operand.hbm [shape: f32[16,128], index: 0, kind: input, shape index: {}]
  %s1 = inlined_call_operand.hbm [shape: f32[128,128], index: 1, kind: input, shape index: {}]
  %s2 = inlined_call_operand.vmem [shape: f32[1,128], index: 2, kind: input, shape index: {}]
  %s3 = inlined_call_operand.hbm [shape: f32[128,128], index: 3, kind: input, shape index: {}]
  %s4 = inlined_call_operand.vmem [shape: f32[1,128], index: 4, kind: input, shape index: {}]
  %s5 = inlined_call_operand.hbm [shape: f32[128,128], index: 5, kind: input, shape index: {}]
  %s6 = inlined_call_operand.vmem [shape: f32[1,128], index: 6, kind: input, shape index: {}]
  %s7 = inlined_call_operand.hbm [shape: f32[16,128], index: 7, kind: output, shape index: {}]
  %s8 = sld [smem:[#allocation0]]
  $region54: #{tpu_custom_call.1} parent=0
    _
  %s10 = ssub.s32 1, %s8
  %s11 = scalar_select 0, %s10, %s8
  $region1: #{tpu_custom_call.1} parent=0
    #allocation2 [shape = 'u8[8192]{0}', space=vmem, size = 0x2000, scoped, tag = 'input window, operand 0, single buffered']
    #allocation3 [shape = 's32[1]{0}', space=sflag, size = 0x4, scoped, tag = 'scoped memory for tpu_custom_call.1']
    #allocation4 [shape = 's32[1]{0}', space=sflag, size = 0x4, scoped, tag = 'scoped memory for tpu_custom_call.1']
    #allocation5 [shape = 'u8[65536]{0}', space=vmem, size = 0x10000, scoped, tag = 'input window, operand 1, single buffered']
    #allocation6 [shape = 's32[1]{0}', space=sflag, size = 0x4, scoped, tag = 'scoped memory for tpu_custom_call.1']
    #allocation7 [shape = 'u8[65536]{0}', space=vmem, size = 0x10000, scoped, tag = 'input window, operand 3, single buffered']
    #allocation8 [shape = 'u8[65536]{0}', space=vmem, size = 0x10000, scoped, tag = 'input window, operand 5, single buffered']
    #allocation9 [shape = 's32[1]{0}', space=sflag, size = 0x4, scoped, tag = 'scoped memory for tpu_custom_call.1']
    #allocation10 [shape = 'u8[8192]{0}', space=vmem, size = 0x2000, scoped, tag = 'output window, operand 0, single buffered']
    %12 = vsyncpa [#allocation3], 0
    %13 = vsyncpa [#allocation6], 0
    %14 = vsyncpa [#allocation9], 0
    %15 = vsyncpa [#allocation4], 0
    // Predicated region
    $region2: #{tpu_custom_call.1} parent=1 // pred_check
      _
    $region3: #{tpu_custom_call.1} parent=1 // pred_check_branch
      %17 = sbr.rel (0) target = $region5
    $region4: #{tpu_custom_call.1} parent=1 // pred_region
      %19 = vsyncadd [#allocation3], 0
      %s20 = sshll.u32 %s0, 4
      %s21 = int_to_ptr.hbm [resolvable:$true] %s20
      %s22 = sshll.u32 [#allocation2], 4
      %s23 = int_to_ptr.vmem [resolvable:$true] %s22
      %28 = dma.hbm_to_vmem [thread:$0]  %s21, 256, %s23, [#allocation3], 128, 128, 8
    $region5: #{tpu_custom_call.1} parent=1 // pred_fallthru
      _
    // Predicated region
    $region6: #{tpu_custom_call.1} parent=1 // pred_check
      _
    $region7: #{tpu_custom_call.1} parent=1 // pred_check_branch
      %30 = sbr.rel (0) target = $region9
    $region8: #{tpu_custom_call.1} parent=1 // pred_region
      %32 = vsyncadd [#allocation6], 0
      %s33 = sshll.u32 %s1, 4
      %s34 = int_to_ptr.hbm [resolvable:$true] %s33
      %s35 = sshll.u32 [#allocation5], 4
      %s36 = int_to_ptr.vmem [resolvable:$true] %s35
      %41 = dma.hbm_to_vmem [thread:$0]  %s34, 2048, %s36, [#allocation6], 128, 128, 8
    $region9: #{tpu_custom_call.1} parent=1 // pred_fallthru
      _
    // Predicated region
    $region10: #{tpu_custom_call.1} parent=1 // pred_check
      _
    $region11: #{tpu_custom_call.1} parent=1 // pred_check_branch
      %43 = sbr.rel (0) target = $region13
    $region12: #{tpu_custom_call.1} parent=1 // pred_region
      _
    $region13: #{tpu_custom_call.1} parent=1 // pred_fallthru
      _
    // Predicated region
    $region14: #{tpu_custom_call.1} parent=1 // pred_check
      _
    $region15: #{tpu_custom_call.1} parent=1 // pred_check_branch
      %45 = sbr.rel (0) target = $region17
    $region16: #{tpu_custom_call.1} parent=1 // pred_region
      %47 = vsyncadd [#allocation6], 0
      %s48 = sshll.u32 %s3, 4
      %s49 = int_to_ptr.hbm [resolvable:$true] %s48
      %s50 = sshll.u32 [#allocation7], 4
      %s51 = int_to_ptr.vmem [resolvable:$true] %s50
      %56 = dma.hbm_to_vmem [thread:$0]  %s49, 2048, %s51, [#allocation6], 128, 128, 8
    $region17: #{tpu_custom_call.1} parent=1 // pred_fallthru
      _
    // Predicated region
    $region18: #{tpu_custom_call.1} parent=1 // pred_check
      _
    $region19: #{tpu_custom_call.1} parent=1 // pred_check_branch
      %58 = sbr.rel (0) target = $region21
    $region20: #{tpu_custom_call.1} parent=1 // pred_region
      _
    $region21: #{tpu_custom_call.1} parent=1 // pred_fallthru
      _
    // Predicated region
    $region22: #{tpu_custom_call.1} parent=1 // pred_check
      _
    $region23: #{tpu_custom_call.1} parent=1 // pred_check_branch
      %60 = sbr.rel (0) target = $region25
    $region24: #{tpu_custom_call.1} parent=1 // pred_region
      %62 = vsyncadd [#allocation9], 0
      %s63 = sshll.u32 %s5, 4
      %s64 = int_to_ptr.hbm [resolvable:$true] %s63
      %s65 = sshll.u32 [#allocation8], 4
      %s66 = int_to_ptr.vmem [resolvable:$true] %s65
      %71 = dma.hbm_to_vmem [thread:$0]  %s64, 2048, %s66, [#allocation9], 128, 128, 8
    $region25: #{tpu_custom_call.1} parent=1 // pred_fallthru
      _
    // Predicated region
    $region26: #{tpu_custom_call.1} parent=1 // pred_check
      _
    $region27: #{tpu_custom_call.1} parent=1 // pred_check_branch
      %73 = sbr.rel (0) target = $region29
    $region28: #{tpu_custom_call.1} parent=1 // pred_region
      _
    $region29: #{tpu_custom_call.1} parent=1 // pred_fallthru
      _
    // Predicated region
    $region30: #{tpu_custom_call.1} parent=1 // pred_check
      _
    $region31: #{tpu_custom_call.1} parent=1 // pred_check_branch
      %75 = sbr.rel (0) target = $region33
    $region32: #{tpu_custom_call.1} parent=1 // pred_region
      %77 = dma.done [#allocation3], 256
    $region33: #{tpu_custom_call.1} parent=1 // pred_fallthru
      _
    // Predicated region
    $region34: #{tpu_custom_call.1} parent=1 // pred_check
      _
    $region35: #{tpu_custom_call.1} parent=1 // pred_check_branch
      %79 = sbr.rel (0) target = $region37
    $region36: #{tpu_custom_call.1} parent=1 // pred_region
      %81 = dma.done [#allocation6], 2048
    $region37: #{tpu_custom_call.1} parent=1 // pred_fallthru
      _
    // Predicated region
    $region38: #{tpu_custom_call.1} parent=1 // pred_check
      _
    $region39: #{tpu_custom_call.1} parent=1 // pred_check_branch
      %83 = sbr.rel (0) target = $region41
    $region40: #{tpu_custom_call.1} parent=1 // pred_region
      %85 = dma.done [#allocation6], 2048
    $region41: #{tpu_custom_call.1} parent=1 // pred_fallthru
      _
    // Predicated region
    $region42: #{tpu_custom_call.1} parent=1 // pred_check
      _
    $region43: #{tpu_custom_call.1} parent=1 // pred_check_branch
      %87 = sbr.rel (0) target = $region45
    $region44: #{tpu_custom_call.1} parent=1 // pred_region
      %89 = dma.done [#allocation9], 2048
    $region45: #{tpu_custom_call.1} parent=1 // pred_fallthru
      _
    %v90 = vld [vmem:[#allocation2] sm:$0xff]
    %v91 = vld [vmem:[#allocation2 + $0x8] sm:$0xff]
    %v92 = vld [vmem:[#allocation5] sm:$0xff]
    %v93 = vld [vmem:[#allocation5 + $0x8] sm:$0xff]
    %v94 = vld [vmem:[#allocation5 + $0x10] sm:$0xff]
    %v95 = vld [vmem:[#allocation5 + $0x18] sm:$0xff]
    %v96 = vld [vmem:[#allocation5 + $0x20] sm:$0xff]
    %v97 = vld [vmem:[#allocation5 + $0x28] sm:$0xff]
    %v98 = vld [vmem:[#allocation5 + $0x30] sm:$0xff]
    %v99 = vld [vmem:[#allocation5 + $0x38] sm:$0xff]
    %v100 = vld [vmem:[#allocation5 + $0x40] sm:$0xff]
    %v101 = vld [vmem:[#allocation5 + $0x48] sm:$0xff]
    %v102 = vld [vmem:[#allocation5 + $0x50] sm:$0xff]
    %v103 = vld [vmem:[#allocation5 + $0x58] sm:$0xff]
    %v104 = vld [vmem:[#allocation5 + $0x60] sm:$0xff]
    %v105 = vld [vmem:[#allocation5 + $0x68] sm:$0xff]
    %v106 = vld [vmem:[#allocation5 + $0x70] sm:$0xff]
    %v107 = vld [vmem:[#allocation5 + $0x78] sm:$0xff]
    %v108 = vld [vmem:[%s2] sm:$0x1]
    %v110 = vperm.slane %v108, 0
    %112 = vmatpush.msra.mxu0 %v107
    %113 = vmatpush.msra.mxu0 %v106
    %114 = vmatpush.msra.mxu0 %v105
    %115 = vmatpush.msra.mxu0 %v104
    %116 = vmatpush.msra.mxu0 %v103
    %117 = vmatpush.msra.mxu0 %v102
    %118 = vmatpush.msra.mxu0 %v101
    %119 = vmatpush.msra.mxu0 %v100
    %120 = vmatpush.msra.mxu0 %v99
    %121 = vmatpush.msra.mxu0 %v98
    %122 = vmatpush.msra.mxu0 %v97
    %123 = vmatpush.msra.mxu0 %v96
    %124 = vmatpush.msra.mxu0 %v95
    %125 = vmatpush.msra.mxu0 %v94
    %126 = vmatpush.msra.mxu0 %v93
    %127 = vmatpush.msra.mxu0 %v92
    %128 = vmatmul.f32.gmra.mxu0 %v90
    %v129 = vpop.f32.mrf.mxu0
    %v130 = vadd.f32 %v110, %v129
    %131 = vmatmul.f32.gmra.mxu0 %v91
    %v132 = vpop.f32.mrf.mxu0
    %v133 = vadd.f32 %v110, %v132
    %134 = vdwg.mxu0
    %v135 = vmax.f32 %v130, 0.0
    %v136 = vmax.f32 %v133, 0.0
    %v137 = vld [vmem:[#allocation7] sm:$0xff]
    %v138 = vld [vmem:[#allocation7 + $0x8] sm:$0xff]
    %v139 = vld [vmem:[#allocation7 + $0x10] sm:$0xff]
    %v140 = vld [vmem:[#allocation7 + $0x18] sm:$0xff]
    %v141 = vld [vmem:[#allocation7 + $0x20] sm:$0xff]
    %v142 = vld [vmem:[#allocation7 + $0x28] sm:$0xff]
    %v143 = vld [vmem:[#allocation7 + $0x30] sm:$0xff]
    %v144 = vld [vmem:[#allocation7 + $0x38] sm:$0xff]
    %v145 = vld [vmem:[#allocation7 + $0x40] sm:$0xff]
    %v146 = vld [vmem:[#allocation7 + $0x48] sm:$0xff]
    %v147 = vld [vmem:[#allocation7 + $0x50] sm:$0xff]
    %v148 = vld [vmem:[#allocation7 + $0x58] sm:$0xff]
    %v149 = vld [vmem:[#allocation7 + $0x60] sm:$0xff]
    %v150 = vld [vmem:[#allocation7 + $0x68] sm:$0xff]
    %v151 = vld [vmem:[#allocation7 + $0x70] sm:$0xff]
    %v152 = vld [vmem:[#allocation7 + $0x78] sm:$0xff]
    %v153 = vld [vmem:[%s4] sm:$0x1]
    %v155 = vperm.slane %v153, 0
    %157 = vmatpush.msra.mxu0 %v152
    %158 = vmatpush.msra.mxu0 %v151
    %159 = vmatpush.msra.mxu0 %v150
    %160 = vmatpush.msra.mxu0 %v149
    %161 = vmatpush.msra.mxu0 %v148
    %162 = vmatpush.msra.mxu0 %v147
    %163 = vmatpush.msra.mxu0 %v146
    %164 = vmatpush.msra.mxu0 %v145
    %165 = vmatpush.msra.mxu0 %v144
    %166 = vmatpush.msra.mxu0 %v143
    %167 = vmatpush.msra.mxu0 %v142
    %168 = vmatpush.msra.mxu0 %v141
    %169 = vmatpush.msra.mxu0 %v140
    %170 = vmatpush.msra.mxu0 %v139
    %171 = vmatpush.msra.mxu0 %v138
    %172 = vmatpush.msra.mxu0 %v137
    %173 = vmatmul.f32.gmra.mxu0 %v135
    %v174 = vpop.f32.mrf.mxu0
    %v175 = vadd.f32 %v155, %v174
    %176 = vmatmul.f32.gmra.mxu0 %v136
    %v177 = vpop.f32.mrf.mxu0
    %v178 = vadd.f32 %v155, %v177
    %179 = vdwg.mxu0
    %v180 = vadd.f32 %v175, %v178
    %v181 = vrot.slane %v180, 4
    %v182 = vadd.f32 %v180, %v181
    %v183 = vrot.slane %v182, 2
    %v184 = vadd.f32 %v182, %v183
    %v185 = vrot.slane %v184, 1
    %v186 = vadd.f32 %v184, %v185
    %v187 = vrcp.pop 16.0
    %v188 = vmul.f32 16.0, %v187
    %v189 = vsub.f32 1.0, %v188
    %v190 = vmul.f32 %v187, %v189
    %v191 = vadd.f32 %v187, %v190
    %vm192 = vweird.f32 %v187
    %v193 = vsel %vm192, %v187, %v191
    %v194 = vmul.f32 %v186, %v193
    %v195 = vsub.f32 %v175, %v194
    %v196 = vsub.f32 %v178, %v194
    %v197 = vmul.f32 %v195, %v195
    %v198 = vmul.f32 %v196, %v196
    %v199 = vadd.f32 %v197, %v198
    %v200 = vrot.slane %v199, 4
    %v201 = vadd.f32 %v199, %v200
    %v202 = vrot.slane %v201, 2
    %v203 = vadd.f32 %v201, %v202
    %v204 = vrot.slane %v203, 1
    %v205 = vadd.f32 %v203, %v204
    %v206 = vmul.f32 %v205, 0.06666667
    %v207 = vadd.f32 %v206, 1e-05
    %v208 = vrcp.pop %v207
    %v209 = vmul.f32 %v207, %v208
    %v210 = vsub.f32 1.0, %v209
    %v211 = vmul.f32 %v208, %v210
    %v212 = vadd.f32 %v208, %v211
    %vm213 = vweird.f32 %v207
    %vm214 = vweird.f32 %v208
    %vm215 = vmor %vm213, %vm214
    %v216 = vsel %vm215, %v208, %v212
    %v217 = vand.u32 2147483647, %v207
    %vm218 = vcmp.eq.f32.partialorder %v217, 8.507059e+37
    %v219 = vand.u32 %v207, 2147483648
    %v220 = vor.u32 1.1754944e-38, %v219
    %v221 = vsel %vm218, %v220, %v216
    %v222 = vmul.f32 %v195, %v221
    %v223 = vmul.f32 %v196, %v221
    %v224 = vmax.f32 %v222, 0.0
    %v225 = vmax.f32 %v223, 0.0
    %v226 = vadd.f32 %v224, %v225
    %v227 = vrot.slane %v226, 4
    %v228 = vadd.f32 %v226, %v227
    %v229 = vrot.slane %v228, 2
    %v230 = vadd.f32 %v228, %v229
    %v231 = vrot.slane %v230, 1
    %v232 = vadd.f32 %v230, %v231
    %v233 = vmul.f32 %v232, %v193
    %v234 = vsub.f32 %v224, %v233
    %v235 = vsub.f32 %v225, %v233
    %v236 = vmul.f32 %v234, %v234
    %v237 = vmul.f32 %v235, %v235
    %v238 = vadd.f32 %v236, %v237
    %v239 = vrot.slane %v238, 4
    %v240 = vadd.f32 %v238, %v239
    %v241 = vrot.slane %v240, 2
    %v242 = vadd.f32 %v240, %v241
    %v243 = vrot.slane %v242, 1
    %v244 = vadd.f32 %v242, %v243
    %v245 = vmul.f32 %v244, 0.06666667
    %v246 = vadd.f32 %v245, 1e-05
    %v247 = vrcp.pop %v246
    %v248 = vmul.f32 %v246, %v247
    %v249 = vsub.f32 1.0, %v248
    %v250 = vmul.f32 %v247, %v249
    %v251 = vadd.f32 %v247, %v250
    %vm252 = vweird.f32 %v246
    %vm253 = vweird.f32 %v247
    %vm254 = vmor %vm252, %vm253
    %v255 = vsel %vm254, %v247, %v251
    %v256 = vand.u32 2147483647, %v246
    %vm257 = vcmp.eq.f32.partialorder %v256, 8.507059e+37
    %v258 = vand.u32 %v246, 2147483648
    %v259 = vor.u32 1.1754944e-38, %v258
    %v260 = vsel %vm257, %v259, %v255
    %v261 = vmul.f32 %v234, %v260
    %v262 = vmul.f32 %v235, %v260
    %v263 = vld [vmem:[#allocation8] sm:$0xff]
    %v264 = vld [vmem:[#allocation8 + $0x8] sm:$0xff]
    %v265 = vld [vmem:[#allocation8 + $0x10] sm:$0xff]
    %v266 = vld [vmem:[#allocation8 + $0x18] sm:$0xff]
    %v267 = vld [vmem:[#allocation8 + $0x20] sm:$0xff]
    %v268 = vld [vmem:[#allocation8 + $0x28] sm:$0xff]
    %v269 = vld [vmem:[#allocation8 + $0x30] sm:$0xff]
    %v270 = vld [vmem:[#allocation8 + $0x38] sm:$0xff]
    %v271 = vld [vmem:[#allocation8 + $0x40] sm:$0xff]
    %v272 = vld [vmem:[#allocation8 + $0x48] sm:$0xff]
    %v273 = vld [vmem:[#allocation8 + $0x50] sm:$0xff]
    %v274 = vld [vmem:[#allocation8 + $0x58] sm:$0xff]
    %v275 = vld [vmem:[#allocation8 + $0x60] sm:$0xff]
    %v276 = vld [vmem:[#allocation8 + $0x68] sm:$0xff]
    %v277 = vld [vmem:[#allocation8 + $0x70] sm:$0xff]
    %v278 = vld [vmem:[#allocation8 + $0x78] sm:$0xff]
    %v279 = vld [vmem:[%s6] sm:$0x1]
    %v281 = vperm.slane %v279, 0
    %283 = vmatpush.msra.mxu0 %v278
    %284 = vmatpush.msra.mxu0 %v277
    %285 = vmatpush.msra.mxu0 %v276
    %286 = vmatpush.msra.mxu0 %v275
    %287 = vmatpush.msra.mxu0 %v274
    %288 = vmatpush.msra.mxu0 %v273
    %289 = vmatpush.msra.mxu0 %v272
    %290 = vmatpush.msra.mxu0 %v271
    %291 = vmatpush.msra.mxu0 %v270
    %292 = vmatpush.msra.mxu0 %v269
    %293 = vmatpush.msra.mxu0 %v268
    %294 = vmatpush.msra.mxu0 %v267
    %295 = vmatpush.msra.mxu0 %v266
    %296 = vmatpush.msra.mxu0 %v265
    %297 = vmatpush.msra.mxu0 %v264
    %298 = vmatpush.msra.mxu0 %v263
    %299 = vmatmul.f32.gmra.mxu0 %v261
    %v300 = vpop.f32.mrf.mxu0
    %v301 = vadd.f32 %v281, %v300
    %302 = vmatmul.f32.gmra.mxu0 %v262
    %v303 = vpop.f32.mrf.mxu0
    %v304 = vadd.f32 %v281, %v303
    %305 = vdwg.mxu0
    %v306 = vmax.f32 %v301, 0.0
    %v307 = vmax.f32 %v304, 0.0
    %v308 = vmul.f32 %v306, %v306
    %v309 = vmul.f32 %v307, %v307
    %310 = vadd.xlane.f32.xlu0 %v308
    %v311 = vpop.xlane.xlu0 %310
    %312 = vadd.xlane.f32.xlu0 %v309
    %v313 = vpop.xlane.xlu0 %312
    %v314 = vmax.f32 %v311, 1e-30
    %v315 = vmax.f32 %v313, 1e-30
    %v316 = vrsqrt.pop %v314
    %v317 = vmul.f32 %v316, %v314
    %v318 = vmul.f32 %v317, %v316
    %v319 = vmul.f32 0.5, %v318
    %v320 = vsub.f32 1.5, %v319
    %v321 = vmul.f32 %v316, %v320
    %vm322 = vweird.f32 %v314
    %vm323 = vweird.f32 %v316
    %vm324 = vmor %vm322, %vm323
    %v325 = vsel %vm324, %v316, %v321
    %v326 = vrsqrt.pop %v315
    %v327 = vmul.f32 %v326, %v315
    %v328 = vmul.f32 %v327, %v326
    %v329 = vmul.f32 0.5, %v328
    %v330 = vsub.f32 1.5, %v329
    %v331 = vmul.f32 %v326, %v330
    %vm332 = vweird.f32 %v315
    %vm333 = vweird.f32 %v326
    %vm334 = vmor %vm332, %vm333
    %v335 = vsel %vm334, %v326, %v331
    %v336 = vmul.f32 %v306, %v325
    %v337 = vmul.f32 %v307, %v335
    %338 = vst [vmem:[#allocation10] sm:$0xff] %v336
    %339 = vst [vmem:[#allocation10 + $0x8] sm:$0xff] %v337
    // Predicated region
    $region46: #{tpu_custom_call.1} parent=1 // pred_check
      _
    $region47: #{tpu_custom_call.1} parent=1 // pred_check_branch
      %341 = sbr.rel (0) target = $region49
    $region48: #{tpu_custom_call.1} parent=1 // pred_region
      %343 = vsyncadd [#allocation4], 0
      %s344 = sshll.u32 [#allocation10], 4
      %s345 = int_to_ptr.vmem [resolvable:$true] %s344
      %s346 = sshll.u32 %s7, 4
      %s347 = int_to_ptr.hbm [resolvable:$true] %s346
      %352 = dma.vmem_to_hbm [thread:$0]  %s345, 256, %s347, [#allocation4], 128, 128, 8
    $region49: #{tpu_custom_call.1} parent=1 // pred_fallthru
      _
    // Predicated region
    $region50: #{tpu_custom_call.1} parent=1 // pred_check
      _
    $region51: #{tpu_custom_call.1} parent=1 // pred_check_branch
      %354 = sbr.rel (0) target = $region53
    $region52: #{tpu_custom_call.1} parent=1 // pred_region
      %356 = dma.done [#allocation4], 256
    $region53: #{tpu_custom_call.1} parent=1 // pred_fallthru
      _
    %357 = vsyncpa [#allocation3], 1
    %358 = vsyncpa [#allocation6], 1
    %359 = vsyncpa [#allocation9], 1
    %360 = vsyncpa [#allocation4], 1

</llo_original>
